<compile_context>
chip_gen: v5e
topology: v5e:2x2
jax: 0.10.0
libtpu: 0.0.40
codegen_flags: <defaults>
</compile_context>

<pallas_src>
import jax
import jax.numpy as jnp
from jax.experimental import pallas as pl
from jax.experimental.pallas import tpu as pltpu


def _chip_config():
    """Returns (n_parallel_default, vmem_limit_bytes, input_budget_bytes)."""
    kind = ""
    try:
        kind = (jax.devices()[0].device_kind or "").lower().replace(" ", "")
    except Exception:
        pass
    is_v7x = ("v7" in kind) or ("tpu7" in kind)
    multi_tc = is_v7x or ("v4" in kind) or ("v5p" in kind)

    if is_v7x:
        # 64 MiB physical VMEM per TensorCore: leave headroom.
        vmem_limit = 48 * 1024 * 1024
        budget = 28 * 1024 * 1024
    else:
        # v5e / v6e (and v4 / v5p) have 128 MiB physical VMEM; the default
        # scoped limit (16 / 32 MiB) is the real constraint, so raise it.
        vmem_limit = 64 * 1024 * 1024
        budget = 44 * 1024 * 1024

    # Defensive clamp against the actual chip's VMEM capacity.
    try:
        cap = int(pltpu.get_tpu_info().vmem_capacity_bytes)
        vmem_limit = min(vmem_limit, max(cap * 3 // 4, 4 * 1024 * 1024))
        budget = min(budget, vmem_limit * 2 // 3)
    except Exception:
        pass

    return (2 if multi_tc else 1), int(vmem_limit), int(budget)


def _pick_tile_s(S, R, native_itemsize, input_budget_bytes):
    """Largest lane tile (multiple of 128) whose double-buffered input DMAs
    plus the in-kernel f32 working set fit the VMEM budget."""
    lane_S = pl.cdiv(S, 128) * 128
    # 2 inputs x 2 pipeline buffers (native dtype) + ~2 f32-sized temporaries.
    per_lane = R * (2 * 2 * native_itemsize + 2 * 4)
    cap = (input_budget_bytes // max(per_lane, 1)) // 128 * 128
    cap = max(128, cap)
    return int(min(cap, lane_S))


def tversky_loss(pred, target, *, tile_s=None, n_parallel=None):
    """Exact port of TverskyLoss.forward for 5-D NCDHW inputs."""
    assert pred.shape == target.shape and pred.ndim == 5
    N, C = pred.shape[0], pred.shape[1]
    S = pred.shape[2] * pred.shape[3] * pred.shape[4]
    R = N * C

    n_par_default, vmem_limit, budget = _chip_config()
    if n_parallel is None:
        n_parallel = n_par_default

    # Free reshape (view): stream native-dtype data, accumulate in f32 in VMEM.
    p2d = pred.reshape(R, S)
    t2d = target.reshape(R, S)

    itemsize = max(jnp.dtype(pred.dtype).itemsize,
                   jnp.dtype(target.dtype).itemsize)
    if tile_s is None:
        tile_s = _pick_tile_s(S, R, itemsize, budget)
    tile_s = int(tile_s)

    n_k = pl.cdiv(S, tile_s)                  # valid tile positions along S
    n_par = max(1, min(int(n_parallel), n_k))  # megacore split (v7x: 2 TCs)
    n_k2 = pl.cdiv(n_k, n_par)                # reduction steps per chunk

    ragged = (S % tile_s) != 0                # last valid tile is partial
    duplicated = (n_par * n_k2) > n_k         # split re-reads a clamped tile
    needs_mask = ragged or duplicated
    # First global tile index that needs masking.
    mask_from = (n_k - 1) if ragged else n_k

    def kernel(p_ref, t_ref, o_ref, tp_acc, sp_acc, st_acc):
        kk = pl.program_id(1)

        @pl.when(kk == 0)
        def _():
            tp_acc[...] = jnp.zeros_like(tp_acc)
            sp_acc[...] = jnp.zeros_like(sp_acc)
            st_acc[...] = jnp.zeros_like(st_acc)

        p = p_ref[...].astype(jnp.float32)
        t = t_ref[...].astype(jnp.float32)

        def accumulate(pp, tt):
            tp_acc[...] += jnp.sum(pp * tt, axis=-1, keepdims=True)
            sp_acc[...] += jnp.sum(pp, axis=-1, keepdims=True)
            st_acc[...] += jnp.sum(tt, axis=-1, keepdims=True)

        if needs_mask:
            g = pl.program_id(0) * n_k2 + kk   # global (unclamped) tile index

            @pl.when(g < mask_from)
            def _():
                accumulate(p, t)               # interior full tiles: no mask

            @pl.when(g >= mask_from)
            def _():
                # Lanes >= remaining are past the end of S (ragged tail) or
                # belong to a duplicated clamped tile (remaining <= 0).
                remaining = S - g * tile_s
                lane = jax.lax.broadcasted_iota(jnp.int32, (1, tile_s), 1)
                valid = lane < remaining
                accumulate(jnp.where(valid, p, 0.0),
                           jnp.where(valid, t, 0.0))
        else:
            accumulate(p, t)

        @pl.when(kk == pl.num_programs(1) - 1)
        def _():
            # Direct column writes: no lane-concat in the epilogue.
            o_ref[0, :, 0:1] = tp_acc[...]
            o_ref[0, :, 1:2] = sp_acc[...]
            o_ref[0, :, 2:3] = st_acc[...]

    def in_map(par, kk):
        # Clamp so duplicated tiles past the end re-read the last valid block;
        # their lanes are fully masked out inside the kernel.
        return (0, jnp.minimum(par * n_k2 + kk, n_k - 1))

    partials = pl.pallas_call(
        kernel,
        out_shape=jax.ShapeDtypeStruct((n_par, R, 3), jnp.float32),
        grid_spec=pltpu.PrefetchScalarGridSpec(
            num_scalar_prefetch=0,
            grid=(n_par, n_k2),
            in_specs=[
                pl.BlockSpec((R, tile_s), in_map),
                pl.BlockSpec((R, tile_s), in_map),
            ],
            out_specs=pl.BlockSpec((1, R, 3), lambda par, kk: (par, 0, 0)),
            scratch_shapes=[pltpu.VMEM((R, 1), jnp.float32)] * 3,
        ),
        compiler_params=pltpu.CompilerParams(
            dimension_semantics=("parallel", "arbitrary"),
            vmem_limit_bytes=vmem_limit,
        ),
    )(p2d, t2d)

    sums = jnp.sum(partials, axis=0).reshape(N, C, 3)
    tp = sums[..., 0]                 # sum(p * t)
    fp = sums[..., 1] - tp            # sum(p) - sum(p*t) = sum(p*(1-t))
    fn = sums[..., 2] - tp            # sum(t) - sum(p*t) = sum((1-p)*t)

    smooth = 1.0
    tversky = tp / (tp + 0.3 * fp + 0.7 * fn + smooth)    # (N, C)
    dice = jnp.sum(tversky, axis=1) / C                   # (N,)
    return jnp.clip(jnp.mean(1.0 - dice), 0.0, 2.0)


def _tversky_loss_ref(pred, target):
    """Pure-JAX reference mirroring the PyTorch loop exactly."""
    smooth = 1.0
    C = pred.shape[1]
    dice = 0.0
    for i in range(C):
        p = pred[:, i]
        t = target[:, i]
        tp = (p * t).sum(axis=(1, 2, 3))
        fp = (p * (1 - t)).sum(axis=(1, 2, 3))
        fn = ((1 - p) * t).sum(axis=(1, 2, 3))
        dice += tp / (tp + 0.3 * fp + 0.7 * fn + smooth)
    dice = dice / C
    return jnp.clip(jnp.mean(1.0 - dice), 0.0, 2.0)


if __name__ == "__main__":
    key = jax.random.PRNGKey(0)
    k1, k2, k3, k4 = jax.random.split(key, 4)

    # Case 1: S = 4*8*16 = 512 (lane-aligned, single tile, no mask path).
    shape1 = (2, 3, 4, 8, 16)
    pred1 = jax.nn.softmax(jax.random.normal(k1, shape1, jnp.float32), axis=1)
    targ1 = (jax.random.uniform(k2, shape1) > 0.5).astype(jnp.float32)

    # Case 2: S = 3*7*11 = 231 (ragged -> exercises in-kernel remainder mask).
    shape2 = (2, 3, 3, 7, 11)
    pred2 = jax.nn.softmax(jax.random.normal(k3, shape2, jnp.float32), axis=1)
    targ2 = (jax.random.uniform(k4, shape2) > 0.5).astype(jnp.float32)

    loss1 = jax.block_until_ready(tversky_loss(pred1, targ1))
    ref1 = jax.block_until_ready(_tversky_loss_ref(pred1, targ1))
    assert jnp.allclose(loss1, ref1, atol=1e-5, rtol=1e-5), (loss1, ref1)

    loss2 = jax.block_until_ready(tversky_loss(pred2, targ2))
    ref2 = jax.block_until_ready(_tversky_loss_ref(pred2, targ2))
    assert jnp.allclose(loss2, ref2, atol=1e-5, rtol=1e-5), (loss2, ref2)

    # Case 3: force small tiles + a 2-way parallel axis (multi-step reduction
    # and megacore path, even on single-TC chips where it is a serial loop).
    loss3 = jax.block_until_ready(
        tversky_loss(pred1, targ1, tile_s=128, n_parallel=2))
    assert jnp.allclose(loss3, ref1, atol=1e-5, rtol=1e-5), (loss3, ref1)

    # Case 4: ragged S with multiple tiles and a 2-way split -> one chunk gets
    # the unmasked interior tile, the other the pl.when-gated masked edge tile.
    loss4 = jax.block_until_ready(
        tversky_loss(pred2, targ2, tile_s=128, n_parallel=2))
    assert jnp.allclose(loss4, ref2, atol=1e-5, rtol=1e-5), (loss4, ref2)

    # Case 5: duplicated clamped tile from an uneven parallel split
    # (S = 4*8*20 = 640 -> 5 tiles of 128, split 3+3 with one fully-masked dup).
    k5, k6 = jax.random.split(k4)
    shape5 = (2, 3, 4, 8, 20)
    pred5 = jax.nn.softmax(jax.random.normal(k5, shape5, jnp.float32), axis=1)
    targ5 = (jax.random.uniform(k6, shape5) > 0.5).astype(jnp.float32)
    loss5 = jax.block_until_ready(
        tversky_loss(pred5, targ5, tile_s=128, n_parallel=2))
    ref5 = jax.block_until_ready(_tversky_loss_ref(pred5, targ5))
    assert jnp.allclose(loss5, ref5, atol=1e-5, rtol=1e-5), (loss5, ref5)

    print("KERNEL_OK")
</pallas_src>

<mosaic_0001>
module attributes {stable_mosaic.version = 11 : i64} {
  func.func @kernel(%arg0: i32, %arg1: i32, %arg2: memref<6x512xf32, #tpu.memory_space<vmem>>, %arg3: memref<6x512xf32, #tpu.memory_space<vmem>>, %arg4: memref<1x6x3xf32, #tpu.memory_space<vmem>>, %arg5: memref<6x1xf32, #tpu.memory_space<vmem>>, %arg6: memref<6x1xf32, #tpu.memory_space<vmem>>, %arg7: memref<6x1xf32, #tpu.memory_space<vmem>>) attributes {dimension_semantics = [#tpu.dimension_semantics<parallel>, #tpu.dimension_semantics<arbitrary>], iteration_bounds = array<i64: 1, 1>, scalar_prefetch = 0 : i64, scratch_operands = 3 : i64, tpu.core_type = #tpu.core_type<tc>, window_params = [{transform_indices = @transform_0, window_bounds = array<i64: 6, 512>}, {transform_indices = @transform_1, window_bounds = array<i64: 6, 512>}, {transform_indices = @transform_2, window_bounds = array<i64: 1, 6, 3>}]} {
    %c0_i32 = arith.constant 0 : i32
    %0 = arith.cmpi eq, %arg1, %c0_i32 : i32
    %1 = arith.extui %0 : i1 to i32
    %c0_i32_0 = arith.constant 0 : i32
    %2 = arith.cmpi ne, %1, %c0_i32_0 : i32
    scf.if %2 {
      %cst_20 = arith.constant 0.000000e+00 : f32
      %24 = vector.broadcast %cst_20 : f32 to vector<6x1xf32>
      %c0_21 = arith.constant 0 : index
      %c0_22 = arith.constant 0 : index
      %25 = vector.load %arg5[%c0_21, %c0_22] : memref<6x1xf32, #tpu.memory_space<vmem>>, vector<6x1xf32>
      tpu.vector_store %arg5[%c0_21, %c0_22], %24 {strides = array<i32>} : memref<6x1xf32, #tpu.memory_space<vmem>>, vector<6x1xf32>,
      %cst_23 = arith.constant 0.000000e+00 : f32
      %26 = vector.broadcast %cst_23 : f32 to vector<6x1xf32>
      %c0_24 = arith.constant 0 : index
      %c0_25 = arith.constant 0 : index
      %27 = vector.load %arg6[%c0_24, %c0_25] : memref<6x1xf32, #tpu.memory_space<vmem>>, vector<6x1xf32>
      tpu.vector_store %arg6[%c0_24, %c0_25], %26 {strides = array<i32>} : memref<6x1xf32, #tpu.memory_space<vmem>>, vector<6x1xf32>,
      %cst_26 = arith.constant 0.000000e+00 : f32
      %28 = vector.broadcast %cst_26 : f32 to vector<6x1xf32>
      %c0_27 = arith.constant 0 : index
      %c0_28 = arith.constant 0 : index
      %29 = vector.load %arg7[%c0_27, %c0_28] : memref<6x1xf32, #tpu.memory_space<vmem>>, vector<6x1xf32>
      tpu.vector_store %arg7[%c0_27, %c0_28], %28 {strides = array<i32>} : memref<6x1xf32, #tpu.memory_space<vmem>>, vector<6x1xf32>,
    } else {
    }
    %c0 = arith.constant 0 : index
    %c0_1 = arith.constant 0 : index
    %3 = vector.load %arg2[%c0, %c0_1] : memref<6x512xf32, #tpu.memory_space<vmem>>, vector<6x512xf32>
    %c0_2 = arith.constant 0 : index
    %c0_3 = arith.constant 0 : index
    %4 = vector.load %arg3[%c0_2, %c0_3] : memref<6x512xf32, #tpu.memory_space<vmem>>, vector<6x512xf32>
    %c0_4 = arith.constant 0 : index
    %c0_5 = arith.constant 0 : index
    %5 = vector.load %arg5[%c0_4, %c0_5] : memref<6x1xf32, #tpu.memory_space<vmem>>, vector<6x1xf32>
    %6 = arith.mulf %3, %4 : vector<6x512xf32>
    %cst = arith.constant dense<0.000000e+00> : vector<6xf32>
    %7 = vector.multi_reduction <add>, %6, %cst [1] : vector<6x512xf32> to vector<6xf32>
    %8 = vector.shape_cast %7 : vector<6xf32> to vector<6x1xf32>
    %9 = arith.addf %5, %8 : vector<6x1xf32>
    %c0_6 = arith.constant 0 : index
    %c0_7 = arith.constant 0 : index
    %10 = vector.load %arg5[%c0_6, %c0_7] : memref<6x1xf32, #tpu.memory_space<vmem>>, vector<6x1xf32>
    tpu.vector_store %arg5[%c0_6, %c0_7], %9 {strides = array<i32>} : memref<6x1xf32, #tpu.memory_space<vmem>>, vector<6x1xf32>,
    %c0_8 = arith.constant 0 : index
    %c0_9 = arith.constant 0 : index
    %11 = vector.load %arg6[%c0_8, %c0_9] : memref<6x1xf32, #tpu.memory_space<vmem>>, vector<6x1xf32>
    %cst_10 = arith.constant dense<0.000000e+00> : vector<6xf32>
    %12 = vector.multi_reduction <add>, %3, %cst_10 [1] : vector<6x512xf32> to vector<6xf32>
    %13 = vector.shape_cast %12 : vector<6xf32> to vector<6x1xf32>
    %14 = arith.addf %11, %13 : vector<6x1xf32>
    %c0_11 = arith.constant 0 : index
    %c0_12 = arith.constant 0 : index
    %15 = vector.load %arg6[%c0_11, %c0_12] : memref<6x1xf32, #tpu.memory_space<vmem>>, vector<6x1xf32>
    tpu.vector_store %arg6[%c0_11, %c0_12], %14 {strides = array<i32>} : memref<6x1xf32, #tpu.memory_space<vmem>>, vector<6x1xf32>,
    %c0_13 = arith.constant 0 : index
    %c0_14 = arith.constant 0 : index
    %16 = vector.load %arg7[%c0_13, %c0_14] : memref<6x1xf32, #tpu.memory_space<vmem>>, vector<6x1xf32>
    %cst_15 = arith.constant dense<0.000000e+00> : vector<6xf32>
    %17 = vector.multi_reduction <add>, %4, %cst_15 [1] : vector<6x512xf32> to vector<6xf32>
    %18 = vector.shape_cast %17 : vector<6xf32> to vector<6x1xf32>
    %19 = arith.addf %16, %18 : vector<6x1xf32>
    %c0_16 = arith.constant 0 : index
    %c0_17 = arith.constant 0 : index
    %20 = vector.load %arg7[%c0_16, %c0_17] : memref<6x1xf32, #tpu.memory_space<vmem>>, vector<6x1xf32>
    tpu.vector_store %arg7[%c0_16, %c0_17], %19 {strides = array<i32>} : memref<6x1xf32, #tpu.memory_space<vmem>>, vector<6x1xf32>,
    %c0_i32_18 = arith.constant 0 : i32
    %21 = arith.cmpi eq, %arg1, %c0_i32_18 : i32
    %22 = arith.extui %21 : i1 to i32
    %c0_i32_19 = arith.constant 0 : i32
    %23 = arith.cmpi ne, %22, %c0_i32_19 : i32
    scf.if %23 {
      %c0_20 = arith.constant 0 : index
      %c0_21 = arith.constant 0 : index
      %24 = vector.load %arg5[%c0_20, %c0_21] : memref<6x1xf32, #tpu.memory_space<vmem>>, vector<6x1xf32>
      %c0_22 = arith.constant 0 : index
      %c0_23 = arith.constant 0 : index
      %c0_24 = arith.constant 0 : index
      %25 = vector.load %arg4[%c0_22, %c0_23, %c0_24] : memref<1x6x3xf32, #tpu.memory_space<vmem>>, vector<1x6x1xf32>
      %26 = vector.shape_cast %25 : vector<1x6x1xf32> to vector<6x1xf32>
      %27 = vector.shape_cast %24 : vector<6x1xf32> to vector<1x6x1xf32>
      tpu.vector_store %arg4[%c0_22, %c0_23, %c0_24], %27 {strides = array<i32>} : memref<1x6x3xf32, #tpu.memory_space<vmem>>, vector<1x6x1xf32>,
      %c0_25 = arith.constant 0 : index
      %c0_26 = arith.constant 0 : index
      %28 = vector.load %arg6[%c0_25, %c0_26] : memref<6x1xf32, #tpu.memory_space<vmem>>, vector<6x1xf32>
      %c0_27 = arith.constant 0 : index
      %c0_28 = arith.constant 0 : index
      %c1 = arith.constant 1 : index
      %29 = vector.load %arg4[%c0_27, %c0_28, %c1] : memref<1x6x3xf32, #tpu.memory_space<vmem>>, vector<1x6x1xf32>
      %30 = vector.shape_cast %29 : vector<1x6x1xf32> to vector<6x1xf32>
      %31 = vector.shape_cast %28 : vector<6x1xf32> to vector<1x6x1xf32>
      tpu.vector_store %arg4[%c0_27, %c0_28, %c1], %31 {strides = array<i32>} : memref<1x6x3xf32, #tpu.memory_space<vmem>>, vector<1x6x1xf32>,
      %c0_29 = arith.constant 0 : index
      %c0_30 = arith.constant 0 : index
      %32 = vector.load %arg7[%c0_29, %c0_30] : memref<6x1xf32, #tpu.memory_space<vmem>>, vector<6x1xf32>
      %c0_31 = arith.constant 0 : index
      %c0_32 = arith.constant 0 : index
      %c2 = arith.constant 2 : index
      %33 = vector.load %arg4[%c0_31, %c0_32, %c2] : memref<1x6x3xf32, #tpu.memory_space<vmem>>, vector<1x6x1xf32>
      %34 = vector.shape_cast %33 : vector<1x6x1xf32> to vector<6x1xf32>
      %35 = vector.shape_cast %32 : vector<6x1xf32> to vector<1x6x1xf32>
      tpu.vector_store %arg4[%c0_31, %c0_32, %c2], %35 {strides = array<i32>} : memref<1x6x3xf32, #tpu.memory_space<vmem>>, vector<1x6x1xf32>,
    } else {
    }
    return
  }
  func.func @transform_0(%arg0: i32, %arg1: i32) -> (i32, i32) {
    %c1_i32 = arith.constant 1 : i32
    %0 = arith.muli %arg0, %c1_i32 : i32
    %1 = arith.addi %0, %arg1 : i32
    %c0_i32 = arith.constant 0 : i32
    %2 = arith.minsi %1, %c0_i32 : i32
    %c0_i32_0 = arith.constant 0 : i32
    %c0_i32_1 = arith.constant 0 : i32
    return %c0_i32_0, %2 : i32, i32
  }
  func.func @transform_1(%arg0: i32, %arg1: i32) -> (i32, i32) {
    %c1_i32 = arith.constant 1 : i32
    %0 = arith.muli %arg0, %c1_i32 : i32
    %1 = arith.addi %0, %arg1 : i32
    %c0_i32 = arith.constant 0 : i32
    %2 = arith.minsi %1, %c0_i32 : i32
    %c0_i32_0 = arith.constant 0 : i32
    %c0_i32_1 = arith.constant 0 : i32
    return %c0_i32_0, %2 : i32, i32
  }
  func.func @transform_2(%arg0: i32, %arg1: i32) -> (i32, i32, i32) {
    %c0_i32 = arith.constant 0 : i32
    %c0_i32_0 = arith.constant 0 : i32
    %c0_i32_1 = arith.constant 0 : i32
    return %arg0, %c0_i32, %c0_i32_0 : i32, i32, i32
  }
}

</mosaic_0001>

<llo_original>
// kernel: tpu_custom_call.1
$region0: #{tpu_custom_call.1}
  #allocation0 [shape = 'u32[]', space=smem, size = 0x4, offset = 0x4, fixed_abs, tag = 'smem constant byte address 0x4 - core index']
  #allocation1 [shape = 'u32[72,128]{1,0:T(1,128)}', space=vmem, size = 0x9000, scoped, tag = 'internal scratch']
  #allocation2 [shape = 'f32[6,1]{1,0:T(8,128)}', space=vmem, size = 0x1000, scoped, tag = 'scratch operand']
  #allocation3 [shape = 'f32[6,1]{1,0:T(8,128)}', space=vmem, size = 0x1000, scoped, tag = 'scratch operand']
  #allocation4 [shape = 'f32[6,1]{1,0:T(8,128)}', space=vmem, size = 0x1000, scoped, tag = 'scratch operand']
  %s0 = inlined_call_operand.hbm [shape: f32[6,512], index: 0, kind: input, shape index: {}]
  %s1 = inlined_call_operand.hbm [shape: f32[6,512], index: 1, kind: input, shape index: {}]
  %s2 = inlined_call_operand.vmem [shape: f32[1,6,3], index: 2, kind: output, shape index: {}]
  %s3 = sld [smem:[#allocation0]]
  $region34: #{tpu_custom_call.1} parent=0
    _
  %s5 = ssub.s32 1, %s3
  %s6 = scalar_select 0, %s5, %s3
  $region1: #{tpu_custom_call.1} parent=0
    #allocation5 [shape = 'u8[16384]{0}', space=vmem, size = 0x4000, scoped, tag = 'input window, operand 0, single buffered']
    #allocation6 [shape = 's32[1]{0}', space=sflag, size = 0x4, scoped, tag = 'scoped memory for tpu_custom_call.1']
    #allocation7 [shape = 'u8[16384]{0}', space=vmem, size = 0x4000, scoped, tag = 'input window, operand 1, single buffered']
    #allocation8 [shape = 's32[1]{0}', space=sflag, size = 0x4, scoped, tag = 'scoped memory for tpu_custom_call.1']
    %7 = vsyncpa [#allocation6], 0
    %8 = vsyncpa [#allocation8], 0
    // Predicated region
    $region2: #{tpu_custom_call.1} parent=1 // pred_check
      _
    $region3: #{tpu_custom_call.1} parent=1 // pred_check_branch
      %10 = sbr.rel (0) target = $region5
    $region4: #{tpu_custom_call.1} parent=1 // pred_region
      %s11 = sadd.s32 0, 0
      %p12 = scmp.lt.s32.totalorder %s11, 0
      %s13 = scalar_select %p12, %s11, 0
      %s14 = smul.u32 4, %s13
      %16 = vsyncadd [#allocation6], 0
      %s17 = smul.addr %s14, 8
      %s18 = scalar_lea.hbm %s0, %s17
      %s20 = sshll.u32 %s18, 4
      %s21 = int_to_ptr.hbm [resolvable:$true] %s20
      %s22 = sshll.u32 [#allocation5], 4
      %s23 = int_to_ptr.vmem [resolvable:$true] %s22
      %25 = dma.hbm_to_vmem [thread:$0]  %s21, 512, %s23, [#allocation6]
    $region5: #{tpu_custom_call.1} parent=1 // pred_fallthru
      _
    // Predicated region
    $region6: #{tpu_custom_call.1} parent=1 // pred_check
      _
    $region7: #{tpu_custom_call.1} parent=1 // pred_check_branch
      %27 = sbr.rel (0) target = $region9
    $region8: #{tpu_custom_call.1} parent=1 // pred_region
      %s28 = sadd.s32 0, 0
      %p29 = scmp.lt.s32.totalorder %s28, 0
      %s30 = scalar_select %p29, %s28, 0
      %s31 = smul.u32 4, %s30
      %33 = vsyncadd [#allocation8], 0
      %s34 = smul.addr %s31, 8
      %s35 = scalar_lea.hbm %s1, %s34
      %s37 = sshll.u32 %s35, 4
      %s38 = int_to_ptr.hbm [resolvable:$true] %s37
      %s39 = sshll.u32 [#allocation7], 4
      %s40 = int_to_ptr.vmem [resolvable:$true] %s39
      %42 = dma.hbm_to_vmem [thread:$0]  %s38, 512, %s40, [#allocation8]
    $region9: #{tpu_custom_call.1} parent=1 // pred_fallthru
      _
    // Predicated region
    $region10: #{tpu_custom_call.1} parent=1 // pred_check
      _
    $region11: #{tpu_custom_call.1} parent=1 // pred_check_branch
      %44 = sbr.rel (0) target = $region13
    $region12: #{tpu_custom_call.1} parent=1 // pred_region
      %46 = dma.done [#allocation6], 512
    $region13: #{tpu_custom_call.1} parent=1 // pred_fallthru
      _
    // Predicated region
    $region14: #{tpu_custom_call.1} parent=1 // pred_check
      _
    $region15: #{tpu_custom_call.1} parent=1 // pred_check_branch
      %48 = sbr.rel (0) target = $region17
    $region16: #{tpu_custom_call.1} parent=1 // pred_region
      %50 = dma.done [#allocation8], 512
    $region17: #{tpu_custom_call.1} parent=1 // pred_fallthru
      _
    %s51 = sadd.s32 0, 0
    %p52 = scmp.lt.s32.totalorder %s51, 0
    %s53 = scalar_select %p52, %s51, 0
    %s54 = smul.u32 4, %s53
    %s55 = sadd.s32 0, 0
    %p56 = scmp.lt.s32.totalorder %s55, 0
    %s57 = scalar_select %p56, %s55, 0
    %s58 = smul.u32 4, %s57
    %p59 = scmp.eq.s32.totalorder 0, 0
    // Predicated region
    $region18: #{tpu_custom_call.1} parent=1 // pred_check
      %p60 = pneg %p59
    $region19: #{tpu_custom_call.1} parent=1 // pred_check_branch
      %62 = sbr.rel (%p60) target = $region21
    $region20: #{tpu_custom_call.1} parent=1 // pred_region
      %vm63 = vcmask 5120
      %64 = vst.msk [vmem:[#allocation2] sm:$0x3f] %vm63, 0.0
      %65 = vst.msk [vmem:[#allocation3] sm:$0x3f] %vm63, 0.0
      %66 = vst.msk [vmem:[#allocation4] sm:$0x3f] %vm63, 0.0
    $region21: #{tpu_custom_call.1} parent=1 // pred_fallthru
      _
    %v67 = vld [vmem:[#allocation5] sm:$0x3f]
    %v68 = vld [vmem:[#allocation5 + $0x8] sm:$0x3f]
    %v69 = vld [vmem:[#allocation5 + $0x10] sm:$0x3f]
    %v70 = vld [vmem:[#allocation5 + $0x18] sm:$0x3f]
    %v71 = vld [vmem:[#allocation7] sm:$0x3f]
    %v72 = vld [vmem:[#allocation7 + $0x8] sm:$0x3f]
    %v73 = vld [vmem:[#allocation7 + $0x10] sm:$0x3f]
    %v74 = vld [vmem:[#allocation7 + $0x18] sm:$0x3f]
    %v75 = vld [vmem:[#allocation2] sm:$0x3f]
    %v76 = vmul.f32 %v67, %v71
    %v77 = vmul.f32 %v68, %v72
    %v78 = vmul.f32 %v69, %v73
    %v79 = vmul.f32 %v70, %v74
    %vm80 = vcmask 1045504
    %v81 = vsel %vm80, %v76, 0.0
    %v82 = vsel %vm80, %v77, 0.0
    %v83 = vadd.f32 %v81, %v82
    %v84 = vsel %vm80, %v78, 0.0
    %v85 = vadd.f32 %v83, %v84
    %v86 = vsel %vm80, %v79, 0.0
    %v87 = vadd.f32 %v85, %v86
    %88 = vadd.xlane.f32.xlu0 %v87
    %v89 = vpop.xlane.xlu0 %88
    %v90 = vadd.f32 %v75, %v89
    %vm91 = vcmask 5120
    %92 = vst.msk [vmem:[#allocation2] sm:$0x3f] %vm91, %v90
    %v93 = vld [vmem:[#allocation3] sm:$0x3f]
    %v94 = vsel %vm80, %v67, 0.0
    %v95 = vsel %vm80, %v68, 0.0
    %v96 = vadd.f32 %v94, %v95
    %v97 = vsel %vm80, %v69, 0.0
    %v98 = vadd.f32 %v96, %v97
    %v99 = vsel %vm80, %v70, 0.0
    %v100 = vadd.f32 %v98, %v99
    %101 = vadd.xlane.f32.xlu0 %v100
    %v102 = vpop.xlane.xlu0 %101
    %v103 = vadd.f32 %v93, %v102
    %104 = vst.msk [vmem:[#allocation3] sm:$0x3f] %vm91, %v103
    %v105 = vld [vmem:[#allocation4] sm:$0x3f]
    %v106 = vsel %vm80, %v71, 0.0
    %v107 = vsel %vm80, %v72, 0.0
    %v108 = vadd.f32 %v106, %v107
    %v109 = vsel %vm80, %v73, 0.0
    %v110 = vadd.f32 %v108, %v109
    %v111 = vsel %vm80, %v74, 0.0
    %v112 = vadd.f32 %v110, %v111
    %113 = vadd.xlane.f32.xlu0 %v112
    %v114 = vpop.xlane.xlu0 %113
    %v115 = vadd.f32 %v105, %v114
    %116 = vst.msk [vmem:[#allocation4] sm:$0x3f] %vm91, %v115
    // Predicated region
    $region22: #{tpu_custom_call.1} parent=1 // pred_check
      %p117 = pneg %p59
    $region23: #{tpu_custom_call.1} parent=1 // pred_check_branch
      %119 = sbr.rel (%p117) target = $region25
    $region24: #{tpu_custom_call.1} parent=1 // pred_region
      %v120 = vld [vmem:[#allocation2] sm:$0x3f]
      %121 = vst.msk [vmem:[%s2] sm:$0x3f] %vm91, %v120
      %v122 = vld [vmem:[#allocation3] sm:$0x3f]
      %124 = vrot.lane.b32.xlu0 %v122, 1
      %v125 = vpop.permute.xlu0 %124
      %vm127 = vcmask 13320
      %128 = vst.msk [vmem:[%s2] sm:$0x3f] %vm127, %v125
      %v129 = vld [vmem:[#allocation4] sm:$0x3f]
      %131 = vrot.lane.b32.xlu0 %v129, 2
      %v132 = vpop.permute.xlu0 %131
      %vm134 = vcmask 21520
      %135 = vst.msk [vmem:[%s2] sm:$0x3f] %vm134, %v132
    $region25: #{tpu_custom_call.1} parent=1 // pred_fallthru
      _
    // Predicated region
    $region26: #{tpu_custom_call.1} parent=1 // pred_check
      _
    $region27: #{tpu_custom_call.1} parent=1 // pred_check_branch
      %137 = sbr.rel (0) target = $region29
    $region28: #{tpu_custom_call.1} parent=1 // pred_region
      _
    $region29: #{tpu_custom_call.1} parent=1 // pred_fallthru
      _
    // Predicated region
    $region30: #{tpu_custom_call.1} parent=1 // pred_check
      _
    $region31: #{tpu_custom_call.1} parent=1 // pred_check_branch
      %139 = sbr.rel (0) target = $region33
    $region32: #{tpu_custom_call.1} parent=1 // pred_region
      _
    $region33: #{tpu_custom_call.1} parent=1 // pred_fallthru
      _
    %140 = vsyncpa [#allocation6], 1
    %141 = vsyncpa [#allocation8], 1

</llo_original>
